<compile_context>
chip_gen: v5e
topology: v5e:2x2
jax: 0.10.0
libtpu: 0.0.40
codegen_flags: <defaults>
</compile_context>

<pallas_src>
import numpy as np

import jax
import jax.numpy as jnp
from jax import lax
from jax.experimental import pallas as pl
from jax.experimental.pallas import tpu as pltpu

BN_EPS = 1e-5


def _interp_matrix(out_size: int, in_size: int) -> np.ndarray:
    """(out_size, in_size) 1-D linear interpolation matrix, align_corners=True."""
    if out_size == 1:
        src = np.zeros((1,), np.float64)
    else:
        src = np.arange(out_size, dtype=np.float64) * ((in_size - 1) / (out_size - 1))
    i0 = np.clip(np.floor(src).astype(np.int64), 0, in_size - 1)
    i1 = np.minimum(i0 + 1, in_size - 1)
    w1 = src - i0
    w0 = 1.0 - w1
    a = np.zeros((out_size, in_size), np.float64)
    a[np.arange(out_size), i0] += w0
    a[np.arange(out_size), i1] += w1
    return a.astype(np.float32)


def _conv_upsample_kernel(x_ref, mT_ref, w_ref, gamma_ref, beta_ref, o_ref):
    """Fused bilinear-upsample (GEMM) + 1x1 conv (GEMM) + BatchNorm2d (batch stats).

    x_ref:     (1, C, HWin)    one batch image, channels x pixels
    mT_ref:    (HWin, HWout)   kron(A_h, A_w)^T interpolation matrix
    w_ref:     (C, C)          1x1 conv weight (Cout, Cin), bias=False
    gamma_ref: (1, C, 1)       BN weight
    beta_ref:  (1, C, 1)       BN bias
    o_ref:     (N, C, HWout)   output, resident across the batch grid axis
    """
    n = pl.program_id(0)
    n_last = pl.num_programs(0) - 1

    # --- bilinear upsample (align_corners=True) as one MXU GEMM ---
    #     (C, HWin) @ (HWin, HWout) -> (C, HWout)    lane-dense result
    up = jnp.dot(x_ref[0], mT_ref[...], preferred_element_type=jnp.float32)

    # --- 1x1 conv (bias=False): channel-mixing GEMM ---
    #     (C, C) @ (C, HWout) -> (C, HWout)
    conv = jnp.dot(w_ref[...], up, preferred_element_type=jnp.float32)

    # Stash this batch's conv result in the resident output block.
    o_ref[n] = conv

    # --- BatchNorm2d, training mode: biased batch statistics over (N, H, W) ---
    # Applied once all batches are resident; two-pass mean/var (no E[x^2]-E[x]^2
    # cancellation).  NOTE: no ReLU — BasicConv2d.forward does not apply it.
    @pl.when(n == n_last)
    def _():
        y = o_ref[...]                                          # (N, C, HWout)
        mean = jnp.mean(y, axis=(0, 2), keepdims=True)          # (1, C, 1)
        var = jnp.mean(jnp.square(y - mean), axis=(0, 2), keepdims=True)
        inv = lax.rsqrt(var + BN_EPS)
        o_ref[...] = (((y - mean) * inv) * gamma_ref[...]
                      + beta_ref[...]).astype(o_ref.dtype)


def conv_upsample_forward(x, target, params):
    """Pallas forward of `conv_upsample`: identity if spatial sizes match, else
    bilinear-upsample (align_corners=True) -> 1x1 conv (no bias) -> BatchNorm2d."""
    w, gamma, beta = params
    N, C, Hin, Win = x.shape
    Hout, Wout = int(target.shape[2]), int(target.shape[3])
    if (Hin, Win) == (Hout, Wout):
        return x  # PyTorch path: no upsample, no conv, no BN

    HWin, HWout = Hin * Win, Hout * Wout

    # Interpolation matrix built host-side from static shapes only (a constant
    # "weight", analogous to conv weights / im2col indices).
    m_T = jnp.asarray(np.kron(_interp_matrix(Hout, Hin), _interp_matrix(Wout, Win)).T)

    # NCHW -> (N, C, H*W) is a free reshape (no transpose, no pad).
    x2 = x.reshape(N, C, HWin).astype(jnp.float32)

    flops = (2 * N * C * HWin * HWout          # upsample GEMM
             + 2 * N * C * C * HWout           # 1x1 conv GEMM
             + 8 * N * C * HWout)              # BN elementwise
    bytes_accessed = 4 * (N * C * HWin + HWin * HWout + C * C + 2 * C + N * C * HWout)

    grid_spec = pltpu.PrefetchScalarGridSpec(
        num_scalar_prefetch=0,
        grid=(N,),
        in_specs=[
            pl.BlockSpec((1, C, HWin), lambda n: (n, 0, 0)),          # x, per batch
            pl.BlockSpec((HWin, HWout), lambda n: (0, 0)),            # interp matrix
            pl.BlockSpec((C, C), lambda n: (0, 0)),                   # conv weight
            pl.BlockSpec((1, C, 1), lambda n: (0, 0, 0)),             # BN gamma
            pl.BlockSpec((1, C, 1), lambda n: (0, 0, 0)),             # BN beta
        ],
        out_specs=pl.BlockSpec((N, C, HWout), lambda n: (0, 0, 0)),   # resident output
    )

    out = pl.pallas_call(
        _conv_upsample_kernel,
        out_shape=jax.ShapeDtypeStruct((N, C, HWout), jnp.float32),
        grid_spec=grid_spec,
        compiler_params=pltpu.CompilerParams(
            # The batch axis carries the global BN reduction -> must be sequential.
            dimension_semantics=("arbitrary",),
            vmem_limit_bytes=32 * 1024 * 1024,   # explicit budget (v7x-safe)
        ),
        cost_estimate=pl.CostEstimate(
            flops=flops, transcendentals=C, bytes_accessed=bytes_accessed),
    )(
        x2,
        m_T,
        w.astype(jnp.float32),
        gamma.reshape(1, C, 1).astype(jnp.float32),
        beta.reshape(1, C, 1).astype(jnp.float32),
    )
    return out.reshape(N, C, Hout, Wout)


def conv_upsample_reference(x, target, params):
    """Pure-JAX reference mirroring the PyTorch forward (training-mode BN)."""
    w, gamma, beta = params
    N, C, Hin, Win = x.shape
    Hout, Wout = int(target.shape[2]), int(target.shape[3])
    if (Hin, Win) == (Hout, Wout):
        return x

    def idx_w(out_size, in_size):
        if out_size == 1:
            src = jnp.zeros((1,), jnp.float32)
        else:
            src = jnp.arange(out_size, dtype=jnp.float32) * ((in_size - 1) / (out_size - 1))
        i0 = jnp.clip(jnp.floor(src).astype(jnp.int32), 0, in_size - 1)
        i1 = jnp.minimum(i0 + 1, in_size - 1)
        frac = src - i0.astype(jnp.float32)
        return i0, i1, frac

    y0, y1, fy = idx_w(Hout, Hin)
    x0, x1, fx = idx_w(Wout, Win)
    xf = x.astype(jnp.float32)
    rows = (xf[:, :, y0, :] * (1.0 - fy)[None, None, :, None]
            + xf[:, :, y1, :] * fy[None, None, :, None])
    up = rows[:, :, :, x0] * (1.0 - fx) + rows[:, :, :, x1] * fx

    conv = jnp.einsum("oc,nchw->nohw", w, up)
    mean = jnp.mean(conv, axis=(0, 2, 3), keepdims=True)
    var = jnp.mean((conv - mean) ** 2, axis=(0, 2, 3), keepdims=True)
    y = (conv - mean) * lax.rsqrt(var + BN_EPS)
    return y * gamma.reshape(1, C, 1, 1) + beta.reshape(1, C, 1, 1)


if __name__ == "__main__":
    # Small shapes consistent with conv_upsample(channel=64):
    # x is 8x8, target is 16x16 -> the upsample+conv+BN path is exercised.
    N, C = 2, 64
    Hin, Win = 8, 8
    Hout, Wout = 16, 16

    key = jax.random.PRNGKey(0)
    k_x, k_w, k_g, k_b = jax.random.split(key, 4)

    x = jax.random.normal(k_x, (N, C, Hin, Win), dtype=jnp.float32)
    target = jnp.zeros((N, C, Hout, Wout), dtype=jnp.float32)  # only its spatial size matters

    w = 0.1 * jax.random.normal(k_w, (C, C), dtype=jnp.float32)            # Conv2d(C,C,1,bias=False)
    gamma = 1.0 + 0.1 * jax.random.normal(k_g, (C,), dtype=jnp.float32)    # BN weight
    beta = 0.1 * jax.random.normal(k_b, (C,), dtype=jnp.float32)           # BN bias
    params = (w, gamma, beta)

    out = conv_upsample_forward(x, target, params)
    out = jax.block_until_ready(out)

    ref = conv_upsample_reference(x, target, params)
    assert out.shape == (N, C, Hout, Wout), out.shape
    max_err = float(jnp.max(jnp.abs(out - ref)))
    assert jnp.allclose(out, ref, atol=1e-4, rtol=1e-4), max_err

    # Identity path: spatial sizes already match -> module returns x unchanged.
    same = conv_upsample_forward(out, out, params)
    assert same is out

    print("KERNEL_OK")
</pallas_src>

<mosaic_0001>
module attributes {stable_mosaic.version = 11 : i64} {
  func.func @_conv_upsample_kernel(%arg0: i32, %arg1: memref<1x64x64xf32, #tpu.memory_space<vmem>>, %arg2: memref<64x256xf32, #tpu.memory_space<vmem>>, %arg3: memref<64x64xf32, #tpu.memory_space<vmem>>, %arg4: memref<1x64x1xf32, #tpu.memory_space<vmem>>, %arg5: memref<1x64x1xf32, #tpu.memory_space<vmem>>, %arg6: memref<2x64x256xf32, #tpu.memory_space<vmem>>) attributes {dimension_semantics = [#tpu.dimension_semantics<arbitrary>], iteration_bounds = array<i64: 2>, scalar_prefetch = 0 : i64, scratch_operands = 0 : i64, tpu.core_type = #tpu.core_type<tc>, window_params = [{transform_indices = @transform_0, window_bounds = array<i64: 1, 64, 64>}, {pipeline_mode = #tpu.pipeline_mode<synchronous>, transform_indices = @transform_1, window_bounds = array<i64: 64, 256>}, {pipeline_mode = #tpu.pipeline_mode<synchronous>, transform_indices = @transform_2, window_bounds = array<i64: 64, 64>}, {pipeline_mode = #tpu.pipeline_mode<synchronous>, transform_indices = @transform_3, window_bounds = array<i64: 1, 64, 1>}, {pipeline_mode = #tpu.pipeline_mode<synchronous>, transform_indices = @transform_4, window_bounds = array<i64: 1, 64, 1>}, {pipeline_mode = #tpu.pipeline_mode<synchronous>, transform_indices = @transform_5, window_bounds = array<i64: 2, 64, 256>}]} {
    %c0 = arith.constant 0 : index
    %c0_0 = arith.constant 0 : index
    %c0_1 = arith.constant 0 : index
    %0 = vector.load %arg1[%c0, %c0_0, %c0_1] : memref<1x64x64xf32, #tpu.memory_space<vmem>>, vector<1x64x64xf32>
    %1 = vector.shape_cast %0 : vector<1x64x64xf32> to vector<64x64xf32>
    %c0_2 = arith.constant 0 : index
    %c0_3 = arith.constant 0 : index
    %2 = vector.load %arg2[%c0_2, %c0_3] : memref<64x256xf32, #tpu.memory_space<vmem>>, vector<64x256xf32>
    %cst = arith.constant dense<0.000000e+00> : vector<64x256xf32>
    %3 = tpu.matmul %1, %2, %cst {dimension_numbers = #tpu.dot_dimension_numbers<[1], [0], [0], [1], [0, 0, 1, 1], [], []>} : vector<64x64xf32>, vector<64x256xf32>, vector<64x256xf32> -> vector<64x256xf32>
    %c0_4 = arith.constant 0 : index
    %c0_5 = arith.constant 0 : index
    %4 = vector.load %arg3[%c0_4, %c0_5] : memref<64x64xf32, #tpu.memory_space<vmem>>, vector<64x64xf32>
    %cst_6 = arith.constant dense<0.000000e+00> : vector<64x256xf32>
    %5 = tpu.matmul %4, %3, %cst_6 {dimension_numbers = #tpu.dot_dimension_numbers<[1], [0], [0], [1], [0, 0, 1, 1], [], []>} : vector<64x64xf32>, vector<64x256xf32>, vector<64x256xf32> -> vector<64x256xf32>
    %6 = arith.index_cast %arg0 : i32 to index
    %c0_7 = arith.constant 0 : index
    %c0_8 = arith.constant 0 : index
    %7 = vector.load %arg6[%6, %c0_7, %c0_8] : memref<2x64x256xf32, #tpu.memory_space<vmem>>, vector<1x64x256xf32>
    %8 = vector.shape_cast %7 : vector<1x64x256xf32> to vector<64x256xf32>
    %9 = vector.shape_cast %5 : vector<64x256xf32> to vector<1x64x256xf32>
    tpu.vector_store %arg6[%6, %c0_7, %c0_8], %9 {strides = array<i32>} : memref<2x64x256xf32, #tpu.memory_space<vmem>>, vector<1x64x256xf32>,
    %c1_i32 = arith.constant 1 : i32
    %10 = arith.cmpi eq, %arg0, %c1_i32 : i32
    %11 = arith.extui %10 : i1 to i32
    %c0_i32 = arith.constant 0 : i32
    %12 = arith.cmpi ne, %11, %c0_i32 : i32
    scf.if %12 {
      %c0_9 = arith.constant 0 : index
      %c0_10 = arith.constant 0 : index
      %c0_11 = arith.constant 0 : index
      %13 = vector.load %arg6[%c0_9, %c0_10, %c0_11] : memref<2x64x256xf32, #tpu.memory_space<vmem>>, vector<2x64x256xf32>
      %cst_12 = arith.constant dense<0.000000e+00> : vector<64xf32>
      %14 = vector.multi_reduction <add>, %13, %cst_12 [0, 2] : vector<2x64x256xf32> to vector<64xf32>
      %15 = vector.shape_cast %14 : vector<64xf32> to vector<1x64x1xf32>
      %cst_13 = arith.constant 5.120000e+02 : f32
      %16 = vector.broadcast %cst_13 : f32 to vector<1x64x1xf32>
      %17 = arith.divf %15, %16 : vector<1x64x1xf32>
      %18 = vector.broadcast %17 : vector<1x64x1xf32> to vector<2x64x256xf32>
      %19 = arith.subf %13, %18 : vector<2x64x256xf32>
      %20 = arith.mulf %19, %19 : vector<2x64x256xf32>
      %cst_14 = arith.constant dense<0.000000e+00> : vector<64xf32>
      %21 = vector.multi_reduction <add>, %20, %cst_14 [0, 2] : vector<2x64x256xf32> to vector<64xf32>
      %22 = vector.shape_cast %21 : vector<64xf32> to vector<1x64x1xf32>
      %cst_15 = arith.constant 5.120000e+02 : f32
      %23 = vector.broadcast %cst_15 : f32 to vector<1x64x1xf32>
      %24 = arith.divf %22, %23 : vector<1x64x1xf32>
      %cst_16 = arith.constant 9.99999974E-6 : f32
      %25 = vector.broadcast %cst_16 : f32 to vector<1x64x1xf32>
      %26 = arith.addf %24, %25 : vector<1x64x1xf32>
      %27 = math.rsqrt %26 : vector<1x64x1xf32>
      %28 = vector.broadcast %17 : vector<1x64x1xf32> to vector<2x64x256xf32>
      %29 = arith.subf %13, %28 : vector<2x64x256xf32>
      %30 = vector.broadcast %27 : vector<1x64x1xf32> to vector<2x64x256xf32>
      %31 = arith.mulf %29, %30 : vector<2x64x256xf32>
      %c0_17 = arith.constant 0 : index
      %c0_18 = arith.constant 0 : index
      %c0_19 = arith.constant 0 : index
      %32 = vector.load %arg4[%c0_17, %c0_18, %c0_19] : memref<1x64x1xf32, #tpu.memory_space<vmem>>, vector<1x64x1xf32>
      %33 = vector.broadcast %32 : vector<1x64x1xf32> to vector<2x64x256xf32>
      %34 = arith.mulf %31, %33 : vector<2x64x256xf32>
      %c0_20 = arith.constant 0 : index
      %c0_21 = arith.constant 0 : index
      %c0_22 = arith.constant 0 : index
      %35 = vector.load %arg5[%c0_20, %c0_21, %c0_22] : memref<1x64x1xf32, #tpu.memory_space<vmem>>, vector<1x64x1xf32>
      %36 = vector.broadcast %35 : vector<1x64x1xf32> to vector<2x64x256xf32>
      %37 = arith.addf %34, %36 : vector<2x64x256xf32>
      %c0_23 = arith.constant 0 : index
      %c0_24 = arith.constant 0 : index
      %c0_25 = arith.constant 0 : index
      %38 = vector.load %arg6[%c0_23, %c0_24, %c0_25] : memref<2x64x256xf32, #tpu.memory_space<vmem>>, vector<2x64x256xf32>
      tpu.vector_store %arg6[%c0_23, %c0_24, %c0_25], %37 {strides = array<i32>} : memref<2x64x256xf32, #tpu.memory_space<vmem>>, vector<2x64x256xf32>,
    } else {
    }
    return
  }
  func.func @transform_0(%arg0: i32) -> (i32, i32, i32) {
    %c0_i32 = arith.constant 0 : i32
    %c0_i32_0 = arith.constant 0 : i32
    %c0_i32_1 = arith.constant 0 : i32
    return %arg0, %c0_i32, %c0_i32_0 : i32, i32, i32
  }
  func.func @transform_1(%arg0: i32) -> (i32, i32) {
    %c0_i32 = arith.constant 0 : i32
    %c0_i32_0 = arith.constant 0 : i32
    %c0_i32_1 = arith.constant 0 : i32
    return %c0_i32, %c0_i32_0 : i32, i32
  }
  func.func @transform_2(%arg0: i32) -> (i32, i32) {
    %c0_i32 = arith.constant 0 : i32
    %c0_i32_0 = arith.constant 0 : i32
    %c0_i32_1 = arith.constant 0 : i32
    return %c0_i32, %c0_i32_0 : i32, i32
  }
  func.func @transform_3(%arg0: i32) -> (i32, i32, i32) {
    %c0_i32 = arith.constant 0 : i32
    %c0_i32_0 = arith.constant 0 : i32
    %c0_i32_1 = arith.constant 0 : i32
    %c0_i32_2 = arith.constant 0 : i32
    return %c0_i32, %c0_i32_0, %c0_i32_1 : i32, i32, i32
  }
  func.func @transform_4(%arg0: i32) -> (i32, i32, i32) {
    %c0_i32 = arith.constant 0 : i32
    %c0_i32_0 = arith.constant 0 : i32
    %c0_i32_1 = arith.constant 0 : i32
    %c0_i32_2 = arith.constant 0 : i32
    return %c0_i32, %c0_i32_0, %c0_i32_1 : i32, i32, i32
  }
  func.func @transform_5(%arg0: i32) -> (i32, i32, i32) {
    %c0_i32 = arith.constant 0 : i32
    %c0_i32_0 = arith.constant 0 : i32
    %c0_i32_1 = arith.constant 0 : i32
    %c0_i32_2 = arith.constant 0 : i32
    return %c0_i32, %c0_i32_0, %c0_i32_1 : i32, i32, i32
  }
}

</mosaic_0001>

<llo_original>
// kernel: tpu_custom_call.1
$region0: #{tpu_custom_call.1}
  #allocation0 [shape = 'u32[]', space=smem, size = 0x4, offset = 0x4, fixed_abs, tag = 'smem constant byte address 0x4 - core index']
  #allocation1 [shape = 'u32[72,128]{1,0:T(1,128)}', space=vmem, size = 0x9000, scoped, tag = 'internal scratch']
  %s0 = inlined_call_operand.vmem [shape: f32[2,64,64], index: 0, kind: input, shape index: {}]
  %s1 = inlined_call_operand.hbm [shape: f32[64,256], index: 1, kind: input, shape index: {}]
  %s2 = inlined_call_operand.hbm [shape: f32[64,64], index: 2, kind: input, shape index: {}]
  %s3 = inlined_call_operand.vmem [shape: f32[1,64,1], index: 3, kind: input, shape index: {}]
  %s4 = inlined_call_operand.vmem [shape: f32[1,64,1], index: 4, kind: input, shape index: {}]
  %s5 = inlined_call_operand.hbm [shape: f32[2,64,256], index: 5, kind: output, shape index: {}]
  %s6 = sld [smem:[#allocation0]]
  $region65: #{tpu_custom_call.1} parent=0
    _
  %s8 = ssub.s32 1, %s6
  %s9 = scalar_select 0, %s8, %s6
  $region1: #{tpu_custom_call.1} parent=0
    #allocation2 [shape = 'u8[65536]{0}', space=vmem, size = 0x10000, scoped, tag = 'input window, operand 1, single buffered']
    #allocation3 [shape = 's32[2]{0}', space=sflag, size = 0x8, scoped, tag = 'scoped memory for tpu_custom_call.1']
    #allocation4 [shape = 's32[2]{0}', space=sflag, size = 0x8, scoped, tag = 'scoped memory for tpu_custom_call.1']
    #allocation5 [shape = 'u8[32768]{0}', space=vmem, size = 0x8000, scoped, tag = 'input window, operand 2, single buffered']
    #allocation6 [shape = 's32[1]{0}', space=sflag, size = 0x4, scoped, tag = 'scoped memory for tpu_custom_call.1']
    #allocation7 [shape = 'u8[131072]{0}', space=vmem, size = 0x20000, scoped, tag = 'output window, operand 0, single buffered']
    %10 = vsyncpa [#allocation3], 0
    %11 = vsyncpa [#allocation6], 0
    %12 = vsyncpa [#allocation4], 0
    loop: start=0, step=1, limit=4
    $region2: #{tpu_custom_call.1} parent=1 // loop_pre_header
      _
    $region3: #{tpu_custom_call.1} parent=1 // loop_header
      %s14 = sphi 0, %s18
      %p15 = scmp.ge.s32.totalorder %s14, 4
      %s24 = sphi 0, %s26
      %s27 = sphi 0, %s24
      %s28 = sphi 0, %s27
      %s44 = sphi 0, %s28
      %s48 = sphi 0, %s48
      %s50 = sphi 0, %s48
      %s51 = sphi 0, %s50
      %s65 = sphi 0, %s51
      %s69 = sphi 0, %s69
      %s71 = sphi 0, %s69
      %s72 = sphi 0, %s71
      %s86 = sphi 0, %s72
      %s90 = sphi 0, %s90
      %s92 = sphi 0, %s90
      %s93 = sphi 0, %s92
      %s107 = sphi 0, %s93
      %s111 = sphi 0, %s111
      %s113 = sphi 0, %s111
      %s114 = sphi 0, %s113
      %s128 = sphi 0, %s114
      %s132 = sphi 0, %s132
      %s134 = sphi 0, %s132
      %s135 = sphi 0, %s134
      %s149 = sphi 0, %s135
    $region4: #{tpu_custom_call.1} parent=1 // loop_header_branch
      %17 = sbr.rel (%p15) target = $region8
    $region5: #{tpu_custom_call.1} parent=1 // loop_body
      %s19 = ssub.s32 %s14, 1
      %s20 = ssub.s32 %s14, 2
      %s21 = sadd.s32 %s14, 1
      %s22 = ssub.s32 %s14, %s21
      %p23 = scmp.eq.s32.totalorder %s22, 0
      %s25 = sadd.s32 %s24, 1
      %s26 = scalar_select %p23, %s24, %s25
      %p29 = pneg %p23
      %p30 = scmp.eq.s32.totalorder %s14, 1
      %p31 = por %p29, %p30
      %p32 = scmp.ne.s32.totalorder %s24, %s27
      %p33 = scmp.eq.s32.totalorder %s14, 0
      %p34 = por %p32, %p33
      %p35 = scmp.ne.s32.totalorder %s24, %s27
      %p36 = scmp.eq.s32.totalorder %s19, 1
      %p37 = por %p35, %p36
      %p38 = scmp.ne.s32.totalorder %s27, %s28
      %p39 = scmp.eq.s32.totalorder %s19, 0
      %p40 = por %p38, %p39
      %p41 = scmp.ne.s32.totalorder %s27, %s28
      %p42 = scmp.eq.s32.totalorder %s20, 1
      %p43 = por %p41, %p42
      %p45 = scmp.ne.s32.totalorder %s28, %s44
      %p46 = scmp.eq.s32.totalorder %s20, 0
      %p47 = por %p45, %p46
      %s49 = sadd.s32 %s48, 1
      %p52 = scmp.eq.s32.totalorder %s14, 1
      %p53 = scmp.ne.s32.totalorder %s48, %s50
      %p54 = scmp.eq.s32.totalorder %s14, 0
      %p55 = por %p53, %p54
      %p56 = scmp.ne.s32.totalorder %s48, %s50
      %p57 = scmp.eq.s32.totalorder %s19, 1
      %p58 = por %p56, %p57
      %p59 = scmp.ne.s32.totalorder %s50, %s51
      %p60 = scmp.eq.s32.totalorder %s19, 0
      %p61 = por %p59, %p60
      %p62 = scmp.ne.s32.totalorder %s50, %s51
      %p63 = scmp.eq.s32.totalorder %s20, 1
      %p64 = por %p62, %p63
      %p66 = scmp.ne.s32.totalorder %s51, %s65
      %p67 = scmp.eq.s32.totalorder %s20, 0
      %p68 = por %p66, %p67
      %s70 = sadd.s32 %s69, 1
      %p73 = scmp.eq.s32.totalorder %s14, 1
      %p74 = scmp.ne.s32.totalorder %s69, %s71
      %p75 = scmp.eq.s32.totalorder %s14, 0
      %p76 = por %p74, %p75
      %p77 = scmp.ne.s32.totalorder %s69, %s71
      %p78 = scmp.eq.s32.totalorder %s19, 1
      %p79 = por %p77, %p78
      %p80 = scmp.ne.s32.totalorder %s71, %s72
      %p81 = scmp.eq.s32.totalorder %s19, 0
      %p82 = por %p80, %p81
      %p83 = scmp.ne.s32.totalorder %s71, %s72
      %p84 = scmp.eq.s32.totalorder %s20, 1
      %p85 = por %p83, %p84
      %p87 = scmp.ne.s32.totalorder %s72, %s86
      %p88 = scmp.eq.s32.totalorder %s20, 0
      %p89 = por %p87, %p88
      %s91 = sadd.s32 %s90, 1
      %p94 = scmp.eq.s32.totalorder %s14, 1
      %p95 = scmp.ne.s32.totalorder %s90, %s92
      %p96 = scmp.eq.s32.totalorder %s14, 0
      %p97 = por %p95, %p96
      %p98 = scmp.ne.s32.totalorder %s90, %s92
      %p99 = scmp.eq.s32.totalorder %s19, 1
      %p100 = por %p98, %p99
      %p101 = scmp.ne.s32.totalorder %s92, %s93
      %p102 = scmp.eq.s32.totalorder %s19, 0
      %p103 = por %p101, %p102
      %p104 = scmp.ne.s32.totalorder %s92, %s93
      %p105 = scmp.eq.s32.totalorder %s20, 1
      %p106 = por %p104, %p105
      %p108 = scmp.ne.s32.totalorder %s93, %s107
      %p109 = scmp.eq.s32.totalorder %s20, 0
      %p110 = por %p108, %p109
      %s112 = sadd.s32 %s111, 1
      %p115 = scmp.eq.s32.totalorder %s14, 1
      %p116 = scmp.ne.s32.totalorder %s111, %s113
      %p117 = scmp.eq.s32.totalorder %s14, 0
      %p118 = por %p116, %p117
      %p119 = scmp.ne.s32.totalorder %s111, %s113
      %p120 = scmp.eq.s32.totalorder %s19, 1
      %p121 = por %p119, %p120
      %p122 = scmp.ne.s32.totalorder %s113, %s114
      %p123 = scmp.eq.s32.totalorder %s19, 0
      %p124 = por %p122, %p123
      %p125 = scmp.ne.s32.totalorder %s113, %s114
      %p126 = scmp.eq.s32.totalorder %s20, 1
      %p127 = por %p125, %p126
      %p129 = scmp.ne.s32.totalorder %s114, %s128
      %p130 = scmp.eq.s32.totalorder %s20, 0
      %p131 = por %p129, %p130
      %s133 = sadd.s32 %s132, 1
      %p136 = scmp.eq.s32.totalorder %s14, 1
      %p137 = scmp.ne.s32.totalorder %s132, %s134
      %p138 = scmp.eq.s32.totalorder %s14, 0
      %p139 = por %p137, %p138
      %p140 = scmp.ne.s32.totalorder %s132, %s134
      %p141 = scmp.eq.s32.totalorder %s19, 1
      %p142 = por %p140, %p141
      %p143 = scmp.ne.s32.totalorder %s134, %s135
      %p144 = scmp.eq.s32.totalorder %s19, 0
      %p145 = por %p143, %p144
      %p146 = scmp.ne.s32.totalorder %s134, %s135
      %p147 = scmp.eq.s32.totalorder %s20, 1
      %p148 = por %p146, %p147
      %p150 = scmp.ne.s32.totalorder %s135, %s149
      %p151 = scmp.eq.s32.totalorder %s20, 0
      %p152 = por %p150, %p151
      %p153 = scmp.le.s32.totalorder 1, %s14
      %p154 = scmp.lt.s32.totalorder %s14, 3
      %p155 = pnand %p153, %p154
      %p156 = pneg %p155
      // Predicated region
      $region9: #{tpu_custom_call.1} parent=5 // pred_check
        _
      $region10: #{tpu_custom_call.1} parent=5 // pred_check_branch
        %158 = sbr.rel (%p155) target = $region12
      $region11: #{tpu_custom_call.1} parent=5 // pred_region
        %s159 = ssub.s32 %s14, 1
        // Predicated region
        $region13: #{tpu_custom_call.1} parent=11 // pred_check
          %p160 = pneg %p61
        $region14: #{tpu_custom_call.1} parent=11 // pred_check_branch
          %162 = sbr.rel (%p160) target = $region16
        $region15: #{tpu_custom_call.1} parent=11 // pred_region
          %164 = vsyncadd [#allocation3], 0
          %s165 = sshll.u32 %s1, 4
          %s166 = int_to_ptr.hbm [resolvable:$true] %s165
          %s167 = sshll.u32 [#allocation2], 4
          %s168 = int_to_ptr.vmem [resolvable:$true] %s167
          %173 = dma.hbm_to_vmem [thread:$0]  %s166, 2048, %s168, [#allocation3], 256, 256, 16
        $region16: #{tpu_custom_call.1} parent=11 // pred_fallthru
          _
        // Predicated region
        $region17: #{tpu_custom_call.1} parent=11 // pred_check
          %p174 = pneg %p82
        $region18: #{tpu_custom_call.1} parent=11 // pred_check_branch
          %176 = sbr.rel (%p174) target = $region20
        $region19: #{tpu_custom_call.1} parent=11 // pred_region
          %178 = vsyncadd [#allocation6], 0
          %s179 = sshll.u32 %s2, 4
          %s180 = int_to_ptr.hbm [resolvable:$true] %s179
          %s181 = sshll.u32 [#allocation5], 4
          %s182 = int_to_ptr.vmem [resolvable:$true] %s181
          %187 = dma.hbm_to_vmem [thread:$0]  %s180, 1024, %s182, [#allocation6], 128, 128, 8
        $region20: #{tpu_custom_call.1} parent=11 // pred_fallthru
          _
        // Predicated region
        $region21: #{tpu_custom_call.1} parent=11 // pred_check
          %p188 = pneg %p103
        $region22: #{tpu_custom_call.1} parent=11 // pred_check_branch
          %190 = sbr.rel (%p188) target = $region24
        $region23: #{tpu_custom_call.1} parent=11 // pred_region
          _
        $region24: #{tpu_custom_call.1} parent=11 // pred_fallthru
          _
        // Predicated region
        $region25: #{tpu_custom_call.1} parent=11 // pred_check
          %p191 = pneg %p124
        $region26: #{tpu_custom_call.1} parent=11 // pred_check_branch
          %193 = sbr.rel (%p191) target = $region28
        $region27: #{tpu_custom_call.1} parent=11 // pred_region
          _
        $region28: #{tpu_custom_call.1} parent=11 // pred_fallthru
          _
      $region12: #{tpu_custom_call.1} parent=5 // pred_fallthru
        _
      %p194 = scmp.lt.s32.totalorder %s14, 2
      // Predicated region
      $region29: #{tpu_custom_call.1} parent=5 // pred_check
        %p195 = pneg %p194
      $region30: #{tpu_custom_call.1} parent=5 // pred_check_branch
        %197 = sbr.rel (%p195) target = $region32
      $region31: #{tpu_custom_call.1} parent=5 // pred_region
        // Predicated region
        $region33: #{tpu_custom_call.1} parent=31 // pred_check
          %p198 = pneg %p34
        $region34: #{tpu_custom_call.1} parent=31 // pred_check_branch
          %200 = sbr.rel (%p198) target = $region36
        $region35: #{tpu_custom_call.1} parent=31 // pred_region
          %p201 = scmp.lt.s32.totalorder %s14, 1
          %s202 = scalar_select %p201, %s14, 1
          %s203 = smul.addr %s202, 8
          %s204 = smul.addr %s203, 8
          %s205 = scalar_lea.vmem %s0, %s204
        $region36: #{tpu_custom_call.1} parent=31 // pred_fallthru
          _
      $region32: #{tpu_custom_call.1} parent=5 // pred_fallthru
        _
      %p206 = scmp.le.s32.totalorder 1, %s14
      %p207 = scmp.lt.s32.totalorder %s14, 3
      %p208 = pnand %p206, %p207
      %p209 = pneg %p208
      // Predicated region
      $region37: #{tpu_custom_call.1} parent=5 // pred_check
        _
      $region38: #{tpu_custom_call.1} parent=5 // pred_check_branch
        %211 = sbr.rel (%p208) target = $region40
      $region39: #{tpu_custom_call.1} parent=5 // pred_region
        %s212 = ssub.s32 %s14, 1
        // Predicated region
        $region41: #{tpu_custom_call.1} parent=39 // pred_check
          %p213 = pneg %p61
        $region42: #{tpu_custom_call.1} parent=39 // pred_check_branch
          %215 = sbr.rel (%p213) target = $region44
        $region43: #{tpu_custom_call.1} parent=39 // pred_region
          %217 = dma.done [#allocation3], 2048
        $region44: #{tpu_custom_call.1} parent=39 // pred_fallthru
          _
        // Predicated region
        $region45: #{tpu_custom_call.1} parent=39 // pred_check
          %p218 = pneg %p82
        $region46: #{tpu_custom_call.1} parent=39 // pred_check_branch
          %220 = sbr.rel (%p218) target = $region48
        $region47: #{tpu_custom_call.1} parent=39 // pred_region
          %222 = dma.done [#allocation6], 1024
        $region48: #{tpu_custom_call.1} parent=39 // pred_fallthru
          _
        %p223 = scmp.lt.s32.totalorder %s19, 1
        %s224 = scalar_select %p223, %s19, 1
        %s225 = smul.addr %s224, 8
        %s226 = smul.addr %s225, 8
        %s227 = scalar_lea.vmem %s0, %s226
        %p228 = pneg %p40
        %p229 = pneg %p37
        %p230 = pneg %p61
        %p231 = pneg %p58
        %p232 = pneg %p82
        %p233 = pneg %p79
        %p234 = pneg %p103
        %p235 = pneg %p100
        %p236 = pneg %p124
        %p237 = pneg %p121
        %p238 = pneg %p145
        %p239 = pneg %p142
        %p240 = scmp.lt.s32.totalorder %s19, 1
        %s241 = scalar_select %p240, %s19, 1
        %s242 = smul.addr %s241, 8
        %s243 = smul.addr %s242, 8
        %s244 = scalar_lea.vmem %s0, %s243
        %v245 = vld [vmem:[%s244] sm:$0xff]
        %v246 = vld [vmem:[%s244 + $0x8] sm:$0xff]
        %v247 = vld [vmem:[%s244 + $0x10] sm:$0xff]
        %v248 = vld [vmem:[%s244 + $0x18] sm:$0xff]
        %v249 = vld [vmem:[%s244 + $0x20] sm:$0xff]
        %v250 = vld [vmem:[%s244 + $0x28] sm:$0xff]
        %v251 = vld [vmem:[%s244 + $0x30] sm:$0xff]
        %v252 = vld [vmem:[%s244 + $0x38] sm:$0xff]
        %v253 = vld [vmem:[#allocation2] sm:$0xff]
        %v254 = vld [vmem:[#allocation2 + $0x8] sm:$0xff]
        %v255 = vld [vmem:[#allocation2 + $0x10] sm:$0xff]
        %v256 = vld [vmem:[#allocation2 + $0x18] sm:$0xff]
        %v257 = vld [vmem:[#allocation2 + $0x20] sm:$0xff]
        %v258 = vld [vmem:[#allocation2 + $0x28] sm:$0xff]
        %v259 = vld [vmem:[#allocation2 + $0x30] sm:$0xff]
        %v260 = vld [vmem:[#allocation2 + $0x38] sm:$0xff]
        %v261 = vld [vmem:[#allocation2 + $0x40] sm:$0xff]
        %v262 = vld [vmem:[#allocation2 + $0x48] sm:$0xff]
        %v263 = vld [vmem:[#allocation2 + $0x50] sm:$0xff]
        %v264 = vld [vmem:[#allocation2 + $0x58] sm:$0xff]
        %v265 = vld [vmem:[#allocation2 + $0x60] sm:$0xff]
        %v266 = vld [vmem:[#allocation2 + $0x68] sm:$0xff]
        %v267 = vld [vmem:[#allocation2 + $0x70] sm:$0xff]
        %v268 = vld [vmem:[#allocation2 + $0x78] sm:$0xff]
        %vm269 = vcmask 523264
        %v271 = vsel %vm269, %v245, 0
        %v274 = vsel %vm269, %v246, 0
        %v277 = vsel %vm269, %v247, 0
        %v280 = vsel %vm269, %v248, 0
        %v283 = vsel %vm269, %v249, 0
        %v286 = vsel %vm269, %v250, 0
        %v289 = vsel %vm269, %v251, 0
        %v292 = vsel %vm269, %v252, 0
        %294 = vmatpush.msra.mxu0 0.0
        %295 = vmatpush.msra.mxu0 0.0
        %296 = vmatpush.msra.mxu0 0.0
        %297 = vmatpush.msra.mxu0 0.0
        %298 = vmatpush.msra.mxu0 0.0
        %299 = vmatpush.msra.mxu0 0.0
        %300 = vmatpush.msra.mxu0 0.0
        %301 = vmatpush.msra.mxu0 0.0
        %302 = vmatpush.msra.mxu0 %v267
        %303 = vmatpush.msra.mxu0 %v265
        %304 = vmatpush.msra.mxu0 %v263
        %305 = vmatpush.msra.mxu0 %v261
        %306 = vmatpush.msra.mxu0 %v259
        %307 = vmatpush.msra.mxu0 %v257
        %308 = vmatpush.msra.mxu0 %v255
        %309 = vmatpush.msra.mxu0 %v253
        %310 = vmatmul.f32.gmra.mxu0 %v271
        %v311 = vpop.f32.mrf.mxu0
        %v312 = vadd.f32 0.0, %v311
        %313 = vmatmul.f32.gmra.mxu0 %v274
        %v314 = vpop.f32.mrf.mxu0
        %v315 = vadd.f32 0.0, %v314
        %316 = vmatmul.f32.gmra.mxu0 %v277
        %v317 = vpop.f32.mrf.mxu0
        %v318 = vadd.f32 0.0, %v317
        %319 = vmatmul.f32.gmra.mxu0 %v280
        %v320 = vpop.f32.mrf.mxu0
        %v321 = vadd.f32 0.0, %v320
        %322 = vmatmul.f32.gmra.mxu0 %v283
        %v323 = vpop.f32.mrf.mxu0
        %v324 = vadd.f32 0.0, %v323
        %325 = vmatmul.f32.gmra.mxu0 %v286
        %v326 = vpop.f32.mrf.mxu0
        %v327 = vadd.f32 0.0, %v326
        %328 = vmatmul.f32.gmra.mxu0 %v289
        %v329 = vpop.f32.mrf.mxu0
        %v330 = vadd.f32 0.0, %v329
        %331 = vmatmul.f32.gmra.mxu0 %v292
        %v332 = vpop.f32.mrf.mxu0
        %v333 = vadd.f32 0.0, %v332
        %334 = vdwg.mxu0
        %335 = vmatpush.msra.mxu0 0.0
        %336 = vmatpush.msra.mxu0 0.0
        %337 = vmatpush.msra.mxu0 0.0
        %338 = vmatpush.msra.mxu0 0.0
        %339 = vmatpush.msra.mxu0 0.0
        %340 = vmatpush.msra.mxu0 0.0
        %341 = vmatpush.msra.mxu0 0.0
        %342 = vmatpush.msra.mxu0 0.0
        %343 = vmatpush.msra.mxu0 %v268
        %344 = vmatpush.msra.mxu0 %v266
        %345 = vmatpush.msra.mxu0 %v264
        %346 = vmatpush.msra.mxu0 %v262
        %347 = vmatpush.msra.mxu0 %v260
        %348 = vmatpush.msra.mxu0 %v258
        %349 = vmatpush.msra.mxu0 %v256
        %350 = vmatpush.msra.mxu0 %v254
        %351 = vmatmul.f32.gmra.mxu0 %v271
        %v352 = vpop.f32.mrf.mxu0
        %v353 = vadd.f32 0.0, %v352
        %354 = vmatmul.f32.gmra.mxu0 %v274
        %v355 = vpop.f32.mrf.mxu0
        %v356 = vadd.f32 0.0, %v355
        %357 = vmatmul.f32.gmra.mxu0 %v277
        %v358 = vpop.f32.mrf.mxu0
        %v359 = vadd.f32 0.0, %v358
        %360 = vmatmul.f32.gmra.mxu0 %v280
        %v361 = vpop.f32.mrf.mxu0
        %v362 = vadd.f32 0.0, %v361
        %363 = vmatmul.f32.gmra.mxu0 %v283
        %v364 = vpop.f32.mrf.mxu0
        %v365 = vadd.f32 0.0, %v364
        %366 = vmatmul.f32.gmra.mxu0 %v286
        %v367 = vpop.f32.mrf.mxu0
        %v368 = vadd.f32 0.0, %v367
        %369 = vmatmul.f32.gmra.mxu0 %v289
        %v370 = vpop.f32.mrf.mxu0
        %v371 = vadd.f32 0.0, %v370
        %372 = vmatmul.f32.gmra.mxu0 %v292
        %v373 = vpop.f32.mrf.mxu0
        %v374 = vadd.f32 0.0, %v373
        %375 = vdwg.mxu0
        %v376 = vld [vmem:[#allocation5] sm:$0xff]
        %v377 = vld [vmem:[#allocation5 + $0x8] sm:$0xff]
        %v378 = vld [vmem:[#allocation5 + $0x10] sm:$0xff]
        %v379 = vld [vmem:[#allocation5 + $0x18] sm:$0xff]
        %v380 = vld [vmem:[#allocation5 + $0x20] sm:$0xff]
        %v381 = vld [vmem:[#allocation5 + $0x28] sm:$0xff]
        %v382 = vld [vmem:[#allocation5 + $0x30] sm:$0xff]
        %v383 = vld [vmem:[#allocation5 + $0x38] sm:$0xff]
        %v385 = vsel %vm269, %v376, 0
        %v388 = vsel %vm269, %v377, 0
        %v391 = vsel %vm269, %v378, 0
        %v394 = vsel %vm269, %v379, 0
        %v397 = vsel %vm269, %v380, 0
        %v400 = vsel %vm269, %v381, 0
        %v403 = vsel %vm269, %v382, 0
        %v406 = vsel %vm269, %v383, 0
        %408 = vmatpush.msra.mxu0 0.0
        %409 = vmatpush.msra.mxu0 0.0
        %410 = vmatpush.msra.mxu0 0.0
        %411 = vmatpush.msra.mxu0 0.0
        %412 = vmatpush.msra.mxu0 0.0
        %413 = vmatpush.msra.mxu0 0.0
        %414 = vmatpush.msra.mxu0 0.0
        %415 = vmatpush.msra.mxu0 0.0
        %416 = vmatpush.msra.mxu0 %v333
        %417 = vmatpush.msra.mxu0 %v330
        %418 = vmatpush.msra.mxu0 %v327
        %419 = vmatpush.msra.mxu0 %v324
        %420 = vmatpush.msra.mxu0 %v321
        %421 = vmatpush.msra.mxu0 %v318
        %422 = vmatpush.msra.mxu0 %v315
        %423 = vmatpush.msra.mxu0 %v312
        %424 = vmatmul.f32.gmra.mxu0 %v385
        %v425 = vpop.f32.mrf.mxu0
        %v426 = vadd.f32 0.0, %v425
        %427 = vmatmul.f32.gmra.mxu0 %v388
        %v428 = vpop.f32.mrf.mxu0
        %v429 = vadd.f32 0.0, %v428
        %430 = vmatmul.f32.gmra.mxu0 %v391
        %v431 = vpop.f32.mrf.mxu0
        %v432 = vadd.f32 0.0, %v431
        %433 = vmatmul.f32.gmra.mxu0 %v394
        %v434 = vpop.f32.mrf.mxu0
        %v435 = vadd.f32 0.0, %v434
        %436 = vmatmul.f32.gmra.mxu0 %v397
        %v437 = vpop.f32.mrf.mxu0
        %v438 = vadd.f32 0.0, %v437
        %439 = vmatmul.f32.gmra.mxu0 %v400
        %v440 = vpop.f32.mrf.mxu0
        %v441 = vadd.f32 0.0, %v440
        %442 = vmatmul.f32.gmra.mxu0 %v403
        %v443 = vpop.f32.mrf.mxu0
        %v444 = vadd.f32 0.0, %v443
        %445 = vmatmul.f32.gmra.mxu0 %v406
        %v446 = vpop.f32.mrf.mxu0
        %v447 = vadd.f32 0.0, %v446
        %448 = vdwg.mxu0
        %449 = vmatpush.msra.mxu0 0.0
        %450 = vmatpush.msra.mxu0 0.0
        %451 = vmatpush.msra.mxu0 0.0
        %452 = vmatpush.msra.mxu0 0.0
        %453 = vmatpush.msra.mxu0 0.0
        %454 = vmatpush.msra.mxu0 0.0
        %455 = vmatpush.msra.mxu0 0.0
        %456 = vmatpush.msra.mxu0 0.0
        %457 = vmatpush.msra.mxu0 %v374
        %458 = vmatpush.msra.mxu0 %v371
        %459 = vmatpush.msra.mxu0 %v368
        %460 = vmatpush.msra.mxu0 %v365
        %461 = vmatpush.msra.mxu0 %v362
        %462 = vmatpush.msra.mxu0 %v359
        %463 = vmatpush.msra.mxu0 %v356
        %464 = vmatpush.msra.mxu0 %v353
        %465 = vmatmul.f32.gmra.mxu0 %v385
        %v466 = vpop.f32.mrf.mxu0
        %v467 = vadd.f32 0.0, %v466
        %468 = vmatmul.f32.gmra.mxu0 %v388
        %v469 = vpop.f32.mrf.mxu0
        %v470 = vadd.f32 0.0, %v469
        %471 = vmatmul.f32.gmra.mxu0 %v391
        %v472 = vpop.f32.mrf.mxu0
        %v473 = vadd.f32 0.0, %v472
        %474 = vmatmul.f32.gmra.mxu0 %v394
        %v475 = vpop.f32.mrf.mxu0
        %v476 = vadd.f32 0.0, %v475
        %477 = vmatmul.f32.gmra.mxu0 %v397
        %v478 = vpop.f32.mrf.mxu0
        %v479 = vadd.f32 0.0, %v478
        %480 = vmatmul.f32.gmra.mxu0 %v400
        %v481 = vpop.f32.mrf.mxu0
        %v482 = vadd.f32 0.0, %v481
        %483 = vmatmul.f32.gmra.mxu0 %v403
        %v484 = vpop.f32.mrf.mxu0
        %v485 = vadd.f32 0.0, %v484
        %486 = vmatmul.f32.gmra.mxu0 %v406
        %v487 = vpop.f32.mrf.mxu0
        %v488 = vadd.f32 0.0, %v487
        %489 = vdwg.mxu0
        %s490 = smul.u32 %s19, 16
        %s491 = smul.addr %s490, 8
        %s492 = scalar_lea.vmem [#allocation7], %s491
        %493 = vst [vmem:[%s492] sm:$0xff] %v426
        %494 = vst [vmem:[%s492 + $0x8] sm:$0xff] %v467
        %495 = vst [vmem:[%s492 + $0x10] sm:$0xff] %v429
        %496 = vst [vmem:[%s492 + $0x18] sm:$0xff] %v470
        %497 = vst [vmem:[%s492 + $0x20] sm:$0xff] %v432
        %498 = vst [vmem:[%s492 + $0x28] sm:$0xff] %v473
        %499 = vst [vmem:[%s492 + $0x30] sm:$0xff] %v435
        %500 = vst [vmem:[%s492 + $0x38] sm:$0xff] %v476
        %501 = vst [vmem:[%s492 + $0x40] sm:$0xff] %v438
        %502 = vst [vmem:[%s492 + $0x48] sm:$0xff] %v479
        %503 = vst [vmem:[%s492 + $0x50] sm:$0xff] %v441
        %504 = vst [vmem:[%s492 + $0x58] sm:$0xff] %v482
        %505 = vst [vmem:[%s492 + $0x60] sm:$0xff] %v444
        %506 = vst [vmem:[%s492 + $0x68] sm:$0xff] %v485
        %507 = vst [vmem:[%s492 + $0x70] sm:$0xff] %v447
        %508 = vst [vmem:[%s492 + $0x78] sm:$0xff] %v488
        %p509 = scmp.eq.s32.totalorder %s19, 1
        // Predicated region
        $region49: #{tpu_custom_call.1} parent=39 // pred_check
          %p510 = pneg %p509
        $region50: #{tpu_custom_call.1} parent=39 // pred_check_branch
          %512 = sbr.rel (%p510) target = $region52
        $region51: #{tpu_custom_call.1} parent=39 // pred_region
          %v513 = vld [vmem:[#allocation7] sm:$0xff]
          %v514 = vld [vmem:[#allocation7 + $0x8] sm:$0xff]
          %v515 = vld [vmem:[#allocation7 + $0x10] sm:$0xff]
          %v516 = vld [vmem:[#allocation7 + $0x18] sm:$0xff]
          %v517 = vld [vmem:[#allocation7 + $0x20] sm:$0xff]
          %v518 = vld [vmem:[#allocation7 + $0x28] sm:$0xff]
          %v519 = vld [vmem:[#allocation7 + $0x30] sm:$0xff]
          %v520 = vld [vmem:[#allocation7 + $0x38] sm:$0xff]
          %v521 = vld [vmem:[#allocation7 + $0x40] sm:$0xff]
          %v522 = vld [vmem:[#allocation7 + $0x48] sm:$0xff]
          %v523 = vld [vmem:[#allocation7 + $0x50] sm:$0xff]
          %v524 = vld [vmem:[#allocation7 + $0x58] sm:$0xff]
          %v525 = vld [vmem:[#allocation7 + $0x60] sm:$0xff]
          %v526 = vld [vmem:[#allocation7 + $0x68] sm:$0xff]
          %v527 = vld [vmem:[#allocation7 + $0x70] sm:$0xff]
          %v528 = vld [vmem:[#allocation7 + $0x78] sm:$0xff]
          %v529 = vld [vmem:[#allocation7 + $0x80] sm:$0xff]
          %v530 = vld [vmem:[#allocation7 + $0x88] sm:$0xff]
          %v531 = vld [vmem:[#allocation7 + $0x90] sm:$0xff]
          %v532 = vld [vmem:[#allocation7 + $0x98] sm:$0xff]
          %v533 = vld [vmem:[#allocation7 + $0xa0] sm:$0xff]
          %v534 = vld [vmem:[#allocation7 + $0xa8] sm:$0xff]
          %v535 = vld [vmem:[#allocation7 + $0xb0] sm:$0xff]
          %v536 = vld [vmem:[#allocation7 + $0xb8] sm:$0xff]
          %v537 = vld [vmem:[#allocation7 + $0xc0] sm:$0xff]
          %v538 = vld [vmem:[#allocation7 + $0xc8] sm:$0xff]
          %v539 = vld [vmem:[#allocation7 + $0xd0] sm:$0xff]
          %v540 = vld [vmem:[#allocation7 + $0xd8] sm:$0xff]
          %v541 = vld [vmem:[#allocation7 + $0xe0] sm:$0xff]
          %v542 = vld [vmem:[#allocation7 + $0xe8] sm:$0xff]
          %v543 = vld [vmem:[#allocation7 + $0xf0] sm:$0xff]
          %v544 = vld [vmem:[#allocation7 + $0xf8] sm:$0xff]
          %v545 = vadd.f32 %v513, %v514
          %v546 = vadd.f32 %v545, %v529
          %v547 = vadd.f32 %v546, %v530
          %548 = vadd.xlane.f32.xlu0 %v547
          %v549 = vpop.xlane.xlu0 %548
          %v550 = vadd.f32 %v515, %v516
          %v551 = vadd.f32 %v550, %v531
          %v552 = vadd.f32 %v551, %v532
          %553 = vadd.xlane.f32.xlu0 %v552
          %v554 = vpop.xlane.xlu0 %553
          %v555 = vadd.f32 %v517, %v518
          %v556 = vadd.f32 %v555, %v533
          %v557 = vadd.f32 %v556, %v534
          %558 = vadd.xlane.f32.xlu0 %v557
          %v559 = vpop.xlane.xlu0 %558
          %v560 = vadd.f32 %v519, %v520
          %v561 = vadd.f32 %v560, %v535
          %v562 = vadd.f32 %v561, %v536
          %563 = vadd.xlane.f32.xlu0 %v562
          %v564 = vpop.xlane.xlu0 %563
          %v565 = vadd.f32 %v521, %v522
          %v566 = vadd.f32 %v565, %v537
          %v567 = vadd.f32 %v566, %v538
          %568 = vadd.xlane.f32.xlu0 %v567
          %v569 = vpop.xlane.xlu0 %568
          %v570 = vadd.f32 %v523, %v524
          %v571 = vadd.f32 %v570, %v539
          %v572 = vadd.f32 %v571, %v540
          %573 = vadd.xlane.f32.xlu0 %v572
          %v574 = vpop.xlane.xlu0 %573
          %v575 = vadd.f32 %v525, %v526
          %v576 = vadd.f32 %v575, %v541
          %v577 = vadd.f32 %v576, %v542
          %578 = vadd.xlane.f32.xlu0 %v577
          %v579 = vpop.xlane.xlu0 %578
          %v580 = vadd.f32 %v527, %v528
          %v581 = vadd.f32 %v580, %v543
          %v582 = vadd.f32 %v581, %v544
          %583 = vadd.xlane.f32.xlu0 %v582
          %v584 = vpop.xlane.xlu0 %583
          %v585 = vrcp.pop 512.0
          %v586 = vmul.f32 512.0, %v585
          %v587 = vsub.f32 1.0, %v586
          %v588 = vmul.f32 %v585, %v587
          %v589 = vadd.f32 %v585, %v588
          %vm590 = vweird.f32 %v585
          %v591 = vsel %vm590, %v585, %v589
          %v592 = vmul.f32 %v549, %v591
          %v593 = vmul.f32 %v554, %v591
          %v594 = vmul.f32 %v559, %v591
          %v595 = vmul.f32 %v564, %v591
          %v596 = vmul.f32 %v569, %v591
          %v597 = vmul.f32 %v574, %v591
          %v598 = vmul.f32 %v579, %v591
          %v599 = vmul.f32 %v584, %v591
          %v600 = vsub.f32 %v513, %v592
          %v601 = vsub.f32 %v514, %v592
          %v602 = vsub.f32 %v515, %v593
          %v603 = vsub.f32 %v516, %v593
          %v604 = vsub.f32 %v517, %v594
          %v605 = vsub.f32 %v518, %v594
          %v606 = vsub.f32 %v519, %v595
          %v607 = vsub.f32 %v520, %v595
          %v608 = vsub.f32 %v521, %v596
          %v609 = vsub.f32 %v522, %v596
          %v610 = vsub.f32 %v523, %v597
          %v611 = vsub.f32 %v524, %v597
          %v612 = vsub.f32 %v525, %v598
          %v613 = vsub.f32 %v526, %v598
          %v614 = vsub.f32 %v527, %v599
          %v615 = vsub.f32 %v528, %v599
          %v616 = vsub.f32 %v529, %v592
          %v617 = vsub.f32 %v530, %v592
          %v618 = vsub.f32 %v531, %v593
          %v619 = vsub.f32 %v532, %v593
          %v620 = vsub.f32 %v533, %v594
          %v621 = vsub.f32 %v534, %v594
          %v622 = vsub.f32 %v535, %v595
          %v623 = vsub.f32 %v536, %v595
          %v624 = vsub.f32 %v537, %v596
          %v625 = vsub.f32 %v538, %v596
          %v626 = vsub.f32 %v539, %v597
          %v627 = vsub.f32 %v540, %v597
          %v628 = vsub.f32 %v541, %v598
          %v629 = vsub.f32 %v542, %v598
          %v630 = vsub.f32 %v543, %v599
          %v631 = vsub.f32 %v544, %v599
          %v632 = vmul.f32 %v600, %v600
          %v633 = vmul.f32 %v601, %v601
          %v634 = vmul.f32 %v602, %v602
          %v635 = vmul.f32 %v603, %v603
          %v636 = vmul.f32 %v604, %v604
          %v637 = vmul.f32 %v605, %v605
          %v638 = vmul.f32 %v606, %v606
          %v639 = vmul.f32 %v607, %v607
          %v640 = vmul.f32 %v608, %v608
          %v641 = vmul.f32 %v609, %v609
          %v642 = vmul.f32 %v610, %v610
          %v643 = vmul.f32 %v611, %v611
          %v644 = vmul.f32 %v612, %v612
          %v645 = vmul.f32 %v613, %v613
          %v646 = vmul.f32 %v614, %v614
          %v647 = vmul.f32 %v615, %v615
          %v648 = vmul.f32 %v616, %v616
          %v649 = vmul.f32 %v617, %v617
          %v650 = vmul.f32 %v618, %v618
          %v651 = vmul.f32 %v619, %v619
          %v652 = vmul.f32 %v620, %v620
          %v653 = vmul.f32 %v621, %v621
          %v654 = vmul.f32 %v622, %v622
          %v655 = vmul.f32 %v623, %v623
          %v656 = vmul.f32 %v624, %v624
          %v657 = vmul.f32 %v625, %v625
          %v658 = vmul.f32 %v626, %v626
          %v659 = vmul.f32 %v627, %v627
          %v660 = vmul.f32 %v628, %v628
          %v661 = vmul.f32 %v629, %v629
          %v662 = vmul.f32 %v630, %v630
          %v663 = vmul.f32 %v631, %v631
          %v664 = vadd.f32 %v632, %v633
          %v665 = vadd.f32 %v664, %v648
          %v666 = vadd.f32 %v665, %v649
          %667 = vadd.xlane.f32.xlu0 %v666
          %v668 = vpop.xlane.xlu0 %667
          %v669 = vadd.f32 %v634, %v635
          %v670 = vadd.f32 %v669, %v650
          %v671 = vadd.f32 %v670, %v651
          %672 = vadd.xlane.f32.xlu0 %v671
          %v673 = vpop.xlane.xlu0 %672
          %v674 = vadd.f32 %v636, %v637
          %v675 = vadd.f32 %v674, %v652
          %v676 = vadd.f32 %v675, %v653
          %677 = vadd.xlane.f32.xlu0 %v676
          %v678 = vpop.xlane.xlu0 %677
          %v679 = vadd.f32 %v638, %v639
          %v680 = vadd.f32 %v679, %v654
          %v681 = vadd.f32 %v680, %v655
          %682 = vadd.xlane.f32.xlu0 %v681
          %v683 = vpop.xlane.xlu0 %682
          %v684 = vadd.f32 %v640, %v641
          %v685 = vadd.f32 %v684, %v656
          %v686 = vadd.f32 %v685, %v657
          %687 = vadd.xlane.f32.xlu0 %v686
          %v688 = vpop.xlane.xlu0 %687
          %v689 = vadd.f32 %v642, %v643
          %v690 = vadd.f32 %v689, %v658
          %v691 = vadd.f32 %v690, %v659
          %692 = vadd.xlane.f32.xlu0 %v691
          %v693 = vpop.xlane.xlu0 %692
          %v694 = vadd.f32 %v644, %v645
          %v695 = vadd.f32 %v694, %v660
          %v696 = vadd.f32 %v695, %v661
          %697 = vadd.xlane.f32.xlu0 %v696
          %v698 = vpop.xlane.xlu0 %697
          %v699 = vadd.f32 %v646, %v647
          %v700 = vadd.f32 %v699, %v662
          %v701 = vadd.f32 %v700, %v663
          %702 = vadd.xlane.f32.xlu0 %v701
          %v703 = vpop.xlane.xlu0 %702
          %v704 = vmul.f32 %v668, %v591
          %v705 = vmul.f32 %v673, %v591
          %v706 = vmul.f32 %v678, %v591
          %v707 = vmul.f32 %v683, %v591
          %v708 = vmul.f32 %v688, %v591
          %v709 = vmul.f32 %v693, %v591
          %v710 = vmul.f32 %v698, %v591
          %v711 = vmul.f32 %v703, %v591
          %v712 = vadd.f32 %v704, 1e-05
          %v713 = vadd.f32 %v705, 1e-05
          %v714 = vadd.f32 %v706, 1e-05
          %v715 = vadd.f32 %v707, 1e-05
          %v716 = vadd.f32 %v708, 1e-05
          %v717 = vadd.f32 %v709, 1e-05
          %v718 = vadd.f32 %v710, 1e-05
          %v719 = vadd.f32 %v711, 1e-05
          %v720 = vrsqrt.pop %v712
          %v721 = vmul.f32 %v720, %v712
          %v722 = vmul.f32 %v721, %v720
          %v723 = vmul.f32 0.5, %v722
          %v724 = vsub.f32 1.5, %v723
          %v725 = vmul.f32 %v720, %v724
          %vm726 = vweird.f32 %v712
          %vm727 = vweird.f32 %v720
          %vm728 = vmor %vm726, %vm727
          %v729 = vsel %vm728, %v720, %v725
          %v730 = vrsqrt.pop %v713
          %v731 = vmul.f32 %v730, %v713
          %v732 = vmul.f32 %v731, %v730
          %v733 = vmul.f32 0.5, %v732
          %v734 = vsub.f32 1.5, %v733
          %v735 = vmul.f32 %v730, %v734
          %vm736 = vweird.f32 %v713
          %vm737 = vweird.f32 %v730
          %vm738 = vmor %vm736, %vm737
          %v739 = vsel %vm738, %v730, %v735
          %v740 = vrsqrt.pop %v714
          %v741 = vmul.f32 %v740, %v714
          %v742 = vmul.f32 %v741, %v740
          %v743 = vmul.f32 0.5, %v742
          %v744 = vsub.f32 1.5, %v743
          %v745 = vmul.f32 %v740, %v744
          %vm746 = vweird.f32 %v714
          %vm747 = vweird.f32 %v740
          %vm748 = vmor %vm746, %vm747
          %v749 = vsel %vm748, %v740, %v745
          %v750 = vrsqrt.pop %v715
          %v751 = vmul.f32 %v750, %v715
          %v752 = vmul.f32 %v751, %v750
          %v753 = vmul.f32 0.5, %v752
          %v754 = vsub.f32 1.5, %v753
          %v755 = vmul.f32 %v750, %v754
          %vm756 = vweird.f32 %v715
          %vm757 = vweird.f32 %v750
          %vm758 = vmor %vm756, %vm757
          %v759 = vsel %vm758, %v750, %v755
          %v760 = vrsqrt.pop %v716
          %v761 = vmul.f32 %v760, %v716
          %v762 = vmul.f32 %v761, %v760
          %v763 = vmul.f32 0.5, %v762
          %v764 = vsub.f32 1.5, %v763
          %v765 = vmul.f32 %v760, %v764
          %vm766 = vweird.f32 %v716
          %vm767 = vweird.f32 %v760
          %vm768 = vmor %vm766, %vm767
          %v769 = vsel %vm768, %v760, %v765
          %v770 = vrsqrt.pop %v717
          %v771 = vmul.f32 %v770, %v717
          %v772 = vmul.f32 %v771, %v770
          %v773 = vmul.f32 0.5, %v772
          %v774 = vsub.f32 1.5, %v773
          %v775 = vmul.f32 %v770, %v774
          %vm776 = vweird.f32 %v717
          %vm777 = vweird.f32 %v770
          %vm778 = vmor %vm776, %vm777
          %v779 = vsel %vm778, %v770, %v775
          %v780 = vrsqrt.pop %v718
          %v781 = vmul.f32 %v780, %v718
          %v782 = vmul.f32 %v781, %v780
          %v783 = vmul.f32 0.5, %v782
          %v784 = vsub.f32 1.5, %v783
          %v785 = vmul.f32 %v780, %v784
          %vm786 = vweird.f32 %v718
          %vm787 = vweird.f32 %v780
          %vm788 = vmor %vm786, %vm787
          %v789 = vsel %vm788, %v780, %v785
          %v790 = vrsqrt.pop %v719
          %v791 = vmul.f32 %v790, %v719
          %v792 = vmul.f32 %v791, %v790
          %v793 = vmul.f32 0.5, %v792
          %v794 = vsub.f32 1.5, %v793
          %v795 = vmul.f32 %v790, %v794
          %vm796 = vweird.f32 %v719
          %vm797 = vweird.f32 %v790
          %vm798 = vmor %vm796, %vm797
          %v799 = vsel %vm798, %v790, %v795
          %v800 = vmul.f32 %v600, %v729
          %v801 = vmul.f32 %v601, %v729
          %v802 = vmul.f32 %v602, %v739
          %v803 = vmul.f32 %v603, %v739
          %v804 = vmul.f32 %v604, %v749
          %v805 = vmul.f32 %v605, %v749
          %v806 = vmul.f32 %v606, %v759
          %v807 = vmul.f32 %v607, %v759
          %v808 = vmul.f32 %v608, %v769
          %v809 = vmul.f32 %v609, %v769
          %v810 = vmul.f32 %v610, %v779
          %v811 = vmul.f32 %v611, %v779
          %v812 = vmul.f32 %v612, %v789
          %v813 = vmul.f32 %v613, %v789
          %v814 = vmul.f32 %v614, %v799
          %v815 = vmul.f32 %v615, %v799
          %v816 = vmul.f32 %v616, %v729
          %v817 = vmul.f32 %v617, %v729
          %v818 = vmul.f32 %v618, %v739
          %v819 = vmul.f32 %v619, %v739
          %v820 = vmul.f32 %v620, %v749
          %v821 = vmul.f32 %v621, %v749
          %v822 = vmul.f32 %v622, %v759
          %v823 = vmul.f32 %v623, %v759
          %v824 = vmul.f32 %v624, %v769
          %v825 = vmul.f32 %v625, %v769
          %v826 = vmul.f32 %v626, %v779
          %v827 = vmul.f32 %v627, %v779
          %v828 = vmul.f32 %v628, %v789
          %v829 = vmul.f32 %v629, %v789
          %v830 = vmul.f32 %v630, %v799
          %v831 = vmul.f32 %v631, %v799
          %v832 = vld [vmem:[%s3] sm:$0xff]
          %v833 = vld [vmem:[%s3 + $0x8] sm:$0xff]
          %v834 = vld [vmem:[%s3 + $0x10] sm:$0xff]
          %v835 = vld [vmem:[%s3 + $0x18] sm:$0xff]
          %v836 = vld [vmem:[%s3 + $0x20] sm:$0xff]
          %v837 = vld [vmem:[%s3 + $0x28] sm:$0xff]
          %v838 = vld [vmem:[%s3 + $0x30] sm:$0xff]
          %v839 = vld [vmem:[%s3 + $0x38] sm:$0xff]
          %841 = vset.pattern.permute.xlu0 0
          %842 = vperm.xlu0 %841, %v832
          %v843 = vpop.permute.xlu0 %842
          %846 = vset.pattern.permute.xlu0 0
          %847 = vperm.xlu0 %846, %v833
          %v848 = vpop.permute.xlu0 %847
          %851 = vset.pattern.permute.xlu0 0
          %852 = vperm.xlu0 %851, %v834
          %v853 = vpop.permute.xlu0 %852
          %856 = vset.pattern.permute.xlu0 0
          %857 = vperm.xlu0 %856, %v835
          %v858 = vpop.permute.xlu0 %857
          %861 = vset.pattern.permute.xlu0 0
          %862 = vperm.xlu0 %861, %v836
          %v863 = vpop.permute.xlu0 %862
          %866 = vset.pattern.permute.xlu0 0
          %867 = vperm.xlu0 %866, %v837
          %v868 = vpop.permute.xlu0 %867
          %871 = vset.pattern.permute.xlu0 0
          %872 = vperm.xlu0 %871, %v838
          %v873 = vpop.permute.xlu0 %872
          %876 = vset.pattern.permute.xlu0 0
          %877 = vperm.xlu0 %876, %v839
          %v878 = vpop.permute.xlu0 %877
          %v880 = vmul.f32 %v800, %v843
          %v881 = vmul.f32 %v801, %v843
          %v882 = vmul.f32 %v802, %v848
          %v883 = vmul.f32 %v803, %v848
          %v884 = vmul.f32 %v804, %v853
          %v885 = vmul.f32 %v805, %v853
          %v886 = vmul.f32 %v806, %v858
          %v887 = vmul.f32 %v807, %v858
          %v888 = vmul.f32 %v808, %v863
          %v889 = vmul.f32 %v809, %v863
          %v890 = vmul.f32 %v810, %v868
          %v891 = vmul.f32 %v811, %v868
          %v892 = vmul.f32 %v812, %v873
          %v893 = vmul.f32 %v813, %v873
          %v894 = vmul.f32 %v814, %v878
          %v895 = vmul.f32 %v815, %v878
          %v896 = vmul.f32 %v816, %v843
          %v897 = vmul.f32 %v817, %v843
          %v898 = vmul.f32 %v818, %v848
          %v899 = vmul.f32 %v819, %v848
          %v900 = vmul.f32 %v820, %v853
          %v901 = vmul.f32 %v821, %v853
          %v902 = vmul.f32 %v822, %v858
          %v903 = vmul.f32 %v823, %v858
          %v904 = vmul.f32 %v824, %v863
          %v905 = vmul.f32 %v825, %v863
          %v906 = vmul.f32 %v826, %v868
          %v907 = vmul.f32 %v827, %v868
          %v908 = vmul.f32 %v828, %v873
          %v909 = vmul.f32 %v829, %v873
          %v910 = vmul.f32 %v830, %v878
          %v911 = vmul.f32 %v831, %v878
          %v912 = vld [vmem:[%s4] sm:$0xff]
          %v913 = vld [vmem:[%s4 + $0x8] sm:$0xff]
          %v914 = vld [vmem:[%s4 + $0x10] sm:$0xff]
          %v915 = vld [vmem:[%s4 + $0x18] sm:$0xff]
          %v916 = vld [vmem:[%s4 + $0x20] sm:$0xff]
          %v917 = vld [vmem:[%s4 + $0x28] sm:$0xff]
          %v918 = vld [vmem:[%s4 + $0x30] sm:$0xff]
          %v919 = vld [vmem:[%s4 + $0x38] sm:$0xff]
          %921 = vset.pattern.permute.xlu0 0
          %922 = vperm.xlu0 %921, %v912
          %v923 = vpop.permute.xlu0 %922
          %926 = vset.pattern.permute.xlu0 0
          %927 = vperm.xlu0 %926, %v913
          %v928 = vpop.permute.xlu0 %927
          %931 = vset.pattern.permute.xlu0 0
          %932 = vperm.xlu0 %931, %v914
          %v933 = vpop.permute.xlu0 %932
          %936 = vset.pattern.permute.xlu0 0
          %937 = vperm.xlu0 %936, %v915
          %v938 = vpop.permute.xlu0 %937
          %941 = vset.pattern.permute.xlu0 0
          %942 = vperm.xlu0 %941, %v916
          %v943 = vpop.permute.xlu0 %942
          %946 = vset.pattern.permute.xlu0 0
          %947 = vperm.xlu0 %946, %v917
          %v948 = vpop.permute.xlu0 %947
          %951 = vset.pattern.permute.xlu0 0
          %952 = vperm.xlu0 %951, %v918
          %v953 = vpop.permute.xlu0 %952
          %956 = vset.pattern.permute.xlu0 0
          %957 = vperm.xlu0 %956, %v919
          %v958 = vpop.permute.xlu0 %957
          %v960 = vadd.f32 %v880, %v923
          %v961 = vadd.f32 %v881, %v923
          %v962 = vadd.f32 %v882, %v928
          %v963 = vadd.f32 %v883, %v928
          %v964 = vadd.f32 %v884, %v933
          %v965 = vadd.f32 %v885, %v933
          %v966 = vadd.f32 %v886, %v938
          %v967 = vadd.f32 %v887, %v938
          %v968 = vadd.f32 %v888, %v943
          %v969 = vadd.f32 %v889, %v943
          %v970 = vadd.f32 %v890, %v948
          %v971 = vadd.f32 %v891, %v948
          %v972 = vadd.f32 %v892, %v953
          %v973 = vadd.f32 %v893, %v953
          %v974 = vadd.f32 %v894, %v958
          %v975 = vadd.f32 %v895, %v958
          %v976 = vadd.f32 %v896, %v923
          %v977 = vadd.f32 %v897, %v923
          %v978 = vadd.f32 %v898, %v928
          %v979 = vadd.f32 %v899, %v928
          %v980 = vadd.f32 %v900, %v933
          %v981 = vadd.f32 %v901, %v933
          %v982 = vadd.f32 %v902, %v938
          %v983 = vadd.f32 %v903, %v938
          %v984 = vadd.f32 %v904, %v943
          %v985 = vadd.f32 %v905, %v943
          %v986 = vadd.f32 %v906, %v948
          %v987 = vadd.f32 %v907, %v948
          %v988 = vadd.f32 %v908, %v953
          %v989 = vadd.f32 %v909, %v953
          %v990 = vadd.f32 %v910, %v958
          %v991 = vadd.f32 %v911, %v958
          %992 = vst [vmem:[#allocation7] sm:$0xff] %v960
          %993 = vst [vmem:[#allocation7 + $0x8] sm:$0xff] %v961
          %994 = vst [vmem:[#allocation7 + $0x10] sm:$0xff] %v962
          %995 = vst [vmem:[#allocation7 + $0x18] sm:$0xff] %v963
          %996 = vst [vmem:[#allocation7 + $0x20] sm:$0xff] %v964
          %997 = vst [vmem:[#allocation7 + $0x28] sm:$0xff] %v965
          %998 = vst [vmem:[#allocation7 + $0x30] sm:$0xff] %v966
          %999 = vst [vmem:[#allocation7 + $0x38] sm:$0xff] %v967
          %1000 = vst [vmem:[#allocation7 + $0x40] sm:$0xff] %v968
          %1001 = vst [vmem:[#allocation7 + $0x48] sm:$0xff] %v969
          %1002 = vst [vmem:[#allocation7 + $0x50] sm:$0xff] %v970
          %1003 = vst [vmem:[#allocation7 + $0x58] sm:$0xff] %v971
          %1004 = vst [vmem:[#allocation7 + $0x60] sm:$0xff] %v972
          %1005 = vst [vmem:[#allocation7 + $0x68] sm:$0xff] %v973
          %1006 = vst [vmem:[#allocation7 + $0x70] sm:$0xff] %v974
          %1007 = vst [vmem:[#allocation7 + $0x78] sm:$0xff] %v975
          %1008 = vst [vmem:[#allocation7 + $0x80] sm:$0xff] %v976
          %1009 = vst [vmem:[#allocation7 + $0x88] sm:$0xff] %v977
          %1010 = vst [vmem:[#allocation7 + $0x90] sm:$0xff] %v978
          %1011 = vst [vmem:[#allocation7 + $0x98] sm:$0xff] %v979
          %1012 = vst [vmem:[#allocation7 + $0xa0] sm:$0xff] %v980
          %1013 = vst [vmem:[#allocation7 + $0xa8] sm:$0xff] %v981
          %1014 = vst [vmem:[#allocation7 + $0xb0] sm:$0xff] %v982
          %1015 = vst [vmem:[#allocation7 + $0xb8] sm:$0xff] %v983
          %1016 = vst [vmem:[#allocation7 + $0xc0] sm:$0xff] %v984
          %1017 = vst [vmem:[#allocation7 + $0xc8] sm:$0xff] %v985
          %1018 = vst [vmem:[#allocation7 + $0xd0] sm:$0xff] %v986
          %1019 = vst [vmem:[#allocation7 + $0xd8] sm:$0xff] %v987
          %1020 = vst [vmem:[#allocation7 + $0xe0] sm:$0xff] %v988
          %1021 = vst [vmem:[#allocation7 + $0xe8] sm:$0xff] %v989
          %1022 = vst [vmem:[#allocation7 + $0xf0] sm:$0xff] %v990
          %1023 = vst [vmem:[#allocation7 + $0xf8] sm:$0xff] %v991
        $region52: #{tpu_custom_call.1} parent=39 // pred_fallthru
          _
        // Predicated region
        $region53: #{tpu_custom_call.1} parent=39 // pred_check
          %p1024 = pneg %p142
        $region54: #{tpu_custom_call.1} parent=39 // pred_check_branch
          %1026 = sbr.rel (%p1024) target = $region56
        $region55: #{tpu_custom_call.1} parent=39 // pred_region
          %1028 = vsyncadd [#allocation4], 0
          %s1029 = sshll.u32 [#allocation7], 4
          %s1030 = int_to_ptr.vmem [resolvable:$true] %s1029
          %s1031 = sshll.u32 %s5, 4
          %s1032 = int_to_ptr.hbm [resolvable:$true] %s1031
          %1037 = dma.vmem_to_hbm [thread:$0]  %s1030, 4096, %s1032, [#allocation4], 256, 256, 16
        $region56: #{tpu_custom_call.1} parent=39 // pred_fallthru
          _
        // Predicated region
        $region57: #{tpu_custom_call.1} parent=39 // pred_check
          %p1038 = pneg %p142
        $region58: #{tpu_custom_call.1} parent=39 // pred_check_branch
          %1040 = sbr.rel (%p1038) target = $region60
        $region59: #{tpu_custom_call.1} parent=39 // pred_region
          %1042 = dma.done [#allocation4], 4096
        $region60: #{tpu_custom_call.1} parent=39 // pred_fallthru
          _
      $region40: #{tpu_custom_call.1} parent=5 // pred_fallthru
        _
      %p1043 = scmp.le.s32.totalorder 2, %s14
      // Predicated region
      $region61: #{tpu_custom_call.1} parent=5 // pred_check
        %p1044 = pneg %p1043
      $region62: #{tpu_custom_call.1} parent=5 // pred_check_branch
        %1046 = sbr.rel (%p1044) target = $region64
      $region63: #{tpu_custom_call.1} parent=5 // pred_region
        %s1047 = ssub.s32 %s14, 2
      $region64: #{tpu_custom_call.1} parent=5 // pred_fallthru
        _
    $region6: #{tpu_custom_call.1} parent=1 // loop_footer
      %s18 = sadd.s32 1, %s14
    $region7: #{tpu_custom_call.1} parent=1 // loop_footer_branch
      %13 = sbr.rel target = $region3
    $region8: #{tpu_custom_call.1} parent=1 // loop_exit
      _
    %1048 = vsyncpa [#allocation3], 1
    %s1049 = scalar_lea.sflag [#allocation3], 1
    %1050 = vsyncpa %s1049, 1
    %1051 = vsyncpa [#allocation6], 1
    %1052 = vsyncpa [#allocation4], 1
    %s1053 = scalar_lea.sflag [#allocation4], 1
    %1054 = vsyncpa %s1053, 1

</llo_original>
